<compile_context>
chip_gen: v7x
topology: tpu7x:2x2x1
jax: 0.10.0
libtpu: 0.0.40
codegen_flags: <defaults>
</compile_context>

<pallas_src>
import jax
import jax.numpy as jnp
from jax.experimental import pallas as pl
from jax.experimental.pallas import tpu as pltpu


def _round_up(x, m):
    return ((x + m - 1) // m) * m


def _pick_tile(dim, candidates, align):
    """Pick a tile size (multiple of `align`) from `candidates` that minimizes the
    padded waste round_up(dim, tile) - dim; ties go to the larger tile (fewer steps)."""
    dim = max(int(dim), 1)
    best_t, best_key = None, None
    for c in candidates:
        t = max(align, min(_round_up(dim, align), _round_up(int(c), align)))
        padded = _round_up(dim, t)
        key = (padded - dim, -t)
        if best_key is None or key < best_key:
            best_key, best_t = key, t
    return best_t, _round_up(dim, best_t)


def _pw_kernel_f32out(x_ref, w_ref, b_ref, o_ref):
    # x_ref: [tm, tk] (compute dtype)   w_ref: [tk, tn] (pre-transposed weight)
    # b_ref: [1, tn] f32                o_ref: [tm, tn] f32
    # K is the LAST grid axis ("arbitrary"): the output block is resident across it,
    # so we accumulate straight into o_ref (no scratch) and add bias on the final step.
    k = pl.program_id(2)
    part = jnp.dot(x_ref[...], w_ref[...], preferred_element_type=jnp.float32)

    @pl.when(k == 0)
    def _init():
        o_ref[...] = part

    @pl.when(k != 0)
    def _accum():
        o_ref[...] += part

    @pl.when(k == pl.num_programs(2) - 1)
    def _bias():
        o_ref[...] += b_ref[...]


def _pw_kernel_acc(x_ref, w_ref, b_ref, o_ref, acc_ref):
    # Generic path for non-f32 outputs: f32 scratch accumulator + cast in the epilogue.
    k = pl.program_id(2)

    @pl.when(k == 0)
    def _init():
        acc_ref[...] = jnp.zeros_like(acc_ref)

    acc_ref[...] += jnp.dot(x_ref[...], w_ref[...], preferred_element_type=jnp.float32)

    @pl.when(k == pl.num_programs(2) - 1)
    def _finalize():
        o_ref[...] = (acc_ref[...] + b_ref[...].astype(jnp.float32)).astype(o_ref.dtype)


def prepare_pw_params(weight, bias, *, compute_dtype=jnp.bfloat16,
                      lane_tile_candidates=(128, 256, 512, 1024)):
    """One-time (per-module) parameter preparation — NOT in the per-call hot path.

    weight : [output_size, input_size]  (PyTorch nn.Linear layout, i.e. [N, K])
    bias   : [output_size]
    Pads N/K to lane-aligned tiles, transposes the weight to [Kp, Np] (so the kernel is
    a plain NN matmul on the MXU) and casts to the compute dtype, all exactly once.
    """
    N, K = weight.shape
    tn, Np = _pick_tile(N, lane_tile_candidates, 128)
    tk, Kp = _pick_tile(K, lane_tile_candidates, 128)

    w = weight
    if (Np, Kp) != (N, K):
        w = jnp.pad(w, ((0, Np - N), (0, Kp - K)))
    w_t = jnp.asarray(w).T.astype(compute_dtype)          # [Kp, Np], cached

    b2d = bias.reshape(1, N).astype(jnp.float32)
    if Np != N:
        b2d = jnp.pad(b2d, ((0, 0), (0, Np - N)))

    return dict(weight_t=w_t, bias=b2d, N=N, K=K, Np=Np, Kp=Kp, tn=tn, tk=tk,
                compute_dtype=jnp.dtype(compute_dtype))


def pw_layer_forward(x, params, *, tm_candidates=(128, 256, 512, 1024)):
    """PWLayer forward: y = x @ weight.T + bias, using pre-prepared params."""
    N, K = params["N"], params["K"]
    Np, Kp = params["Np"], params["Kp"]
    tn, tk = params["tn"], params["tk"]
    w_t, b2d = params["weight_t"], params["bias"]
    compute_dtype = params["compute_dtype"]

    assert x.shape[-1] == K, "input feature dim mismatch"
    lead_shape = x.shape[:-1]
    out_dtype = x.dtype

    x2d = x.reshape(-1, K)
    M = x2d.shape[0]

    # Sub-32-bit dtypes pack along sublanes -> 16-row minimum tile; f32 needs 8.
    c_item = jnp.dtype(compute_dtype).itemsize
    o_item = jnp.dtype(out_dtype).itemsize
    sub_align = 16 if c_item < 4 else 8
    tm, Mp = _pick_tile(M, tm_candidates, sub_align)

    # v7x megacore: if both "parallel" axes collapse to one block, split the M tile
    # (cleanly, no extra padding) so the second TensorCore gets work.
    if (Mp // tm) * (Np // tn) < 2 and tm >= 256 and tm % (2 * sub_align) == 0:
        tm //= 2

    if (Mp, Kp) != (M, K):
        x2d = jnp.pad(x2d, ((0, Mp - M), (0, Kp - K)))
    x2d = x2d.astype(compute_dtype)

    grid = (Mp // tm, Np // tn, Kp // tk)

    direct_f32 = jnp.dtype(out_dtype) == jnp.dtype(jnp.float32)
    kernel = _pw_kernel_f32out if direct_f32 else _pw_kernel_acc
    scratch = [] if direct_f32 else [pltpu.VMEM((tm, tn), jnp.float32)]

    # Explicit scoped-VMEM budget sized from the actual footprint (double-buffered
    # x/w/out tiles + bias + optional acc scratch).  Keeps v5e (16 MiB default) happy
    # and stays far under v7x's 64 MiB physical VMEM per TC at the default tiles.
    vmem_bytes = (2 * (tm * tk + tk * tn) * c_item
                  + 2 * tm * tn * o_item
                  + 2 * tn * 4
                  + (0 if direct_f32 else tm * tn * 4))
    vmem_limit = int(min(100 * 1024 * 1024, max(32 * 1024 * 1024, (vmem_bytes * 3) // 2)))

    cost = pl.CostEstimate(
        flops=2 * M * K * N,
        transcendentals=0,
        bytes_accessed=int((Np // tn) * Mp * Kp * c_item      # x panel re-read per j block
                           + (Mp // tm) * Kp * Np * c_item    # w panel re-read per i block
                           + Mp * Np * o_item + Np * 4),
    )

    out = pl.pallas_call(
        kernel,
        out_shape=jax.ShapeDtypeStruct((Mp, Np), out_dtype),
        grid_spec=pltpu.PrefetchScalarGridSpec(
            num_scalar_prefetch=0,
            grid=grid,                                          # K LAST (reduction axis)
            in_specs=[
                pl.BlockSpec((tm, tk), lambda i, j, k: (i, k)),   # x tile
                pl.BlockSpec((tk, tn), lambda i, j, k: (k, j)),   # weight tile, [K, N] layout
                pl.BlockSpec((1, tn), lambda i, j, k: (0, j)),    # bias tile
            ],
            out_specs=pl.BlockSpec((tm, tn), lambda i, j, k: (i, j)),
            scratch_shapes=scratch,
        ),
        compiler_params=pltpu.CompilerParams(
            dimension_semantics=("parallel", "parallel", "arbitrary"),
            vmem_limit_bytes=vmem_limit,
        ),
        cost_estimate=cost,
    )(x2d, w_t, b2d)

    return out[:M, :N].reshape(*lead_shape, N)


if __name__ == "__main__":
    key = jax.random.PRNGKey(0)
    k_x, k_w, k_b = jax.random.split(key, 3)

    batch, seq, input_size, output_size = 2, 8, 32, 64

    x = jax.random.normal(k_x, (batch, seq, input_size), dtype=jnp.float32)
    # _init_weights: weight ~ N(0, 0.02); small deterministic bias.
    weight = 0.02 * jax.random.normal(k_w, (output_size, input_size), dtype=jnp.float32)
    bias = 0.01 * jax.random.normal(k_b, (output_size,), dtype=jnp.float32)

    y_ref = x @ weight.T + bias

    # Default fast path: bf16 MXU compute, f32 accumulation / output.
    params_bf16 = prepare_pw_params(weight, bias, compute_dtype=jnp.bfloat16)
    y_bf16 = pw_layer_forward(x, params_bf16)
    jax.block_until_ready(y_bf16)
    assert y_bf16.shape == (batch, seq, output_size)
    assert y_bf16.dtype == x.dtype
    assert jnp.allclose(y_bf16, y_ref, atol=1e-2, rtol=1e-2)

    # Exact path: f32 compute matches the PyTorch module numerics.
    params_f32 = prepare_pw_params(weight, bias, compute_dtype=jnp.float32)
    y_f32 = pw_layer_forward(x, params_f32)
    jax.block_until_ready(y_f32)
    assert jnp.allclose(y_f32, y_ref, atol=1e-5, rtol=1e-5)

    print("KERNEL_OK")
</pallas_src>

<mosaic_0001>
module attributes {stable_mosaic.version = 11 : i64} {
  func.func @_pw_kernel_f32out(%arg0: i32, %arg1: i32, %arg2: i32, %arg3: memref<16x128xbf16, #tpu.memory_space<vmem>>, %arg4: memref<128x128xbf16, #tpu.memory_space<vmem>>, %arg5: memref<1x128xf32, #tpu.memory_space<vmem>>, %arg6: memref<16x128xf32, #tpu.memory_space<vmem>>) attributes {dimension_semantics = [#tpu.dimension_semantics<parallel>, #tpu.dimension_semantics<parallel>, #tpu.dimension_semantics<arbitrary>], iteration_bounds = array<i64: 1, 1, 1>, scalar_prefetch = 0 : i64, scratch_operands = 0 : i64, tpu.core_type = #tpu.core_type<tc>, window_params = [{transform_indices = @transform_0, window_bounds = array<i64: 16, 128>}, {transform_indices = @transform_1, window_bounds = array<i64: 128, 128>}, {transform_indices = @transform_2, window_bounds = array<i64: 1, 128>}, {transform_indices = @transform_3, window_bounds = array<i64: 16, 128>}]} {
    %c0 = arith.constant 0 : index
    %c0_0 = arith.constant 0 : index
    %0 = vector.load %arg3[%c0, %c0_0] : memref<16x128xbf16, #tpu.memory_space<vmem>>, vector<16x128xbf16>
    %c0_1 = arith.constant 0 : index
    %c0_2 = arith.constant 0 : index
    %1 = vector.load %arg4[%c0_1, %c0_2] : memref<128x128xbf16, #tpu.memory_space<vmem>>, vector<128x128xbf16>
    %cst = arith.constant dense<0.000000e+00> : vector<16x128xf32>
    %2 = tpu.matmul %0, %1, %cst {dimension_numbers = #tpu.dot_dimension_numbers<[1], [0], [0], [1], [0, 0, 1, 1], [], []>} : vector<16x128xbf16>, vector<128x128xbf16>, vector<16x128xf32> -> vector<16x128xf32>
    %c0_i32 = arith.constant 0 : i32
    %3 = arith.cmpi eq, %arg2, %c0_i32 : i32
    %4 = arith.extui %3 : i1 to i32
    %c0_i32_3 = arith.constant 0 : i32
    %5 = arith.cmpi ne, %4, %c0_i32_3 : i32
    scf.if %5 {
      %c0_8 = arith.constant 0 : index
      %c0_9 = arith.constant 0 : index
      %12 = vector.load %arg6[%c0_8, %c0_9] : memref<16x128xf32, #tpu.memory_space<vmem>>, vector<16x128xf32>
      tpu.vector_store %arg6[%c0_8, %c0_9], %2 {strides = array<i32>} : memref<16x128xf32, #tpu.memory_space<vmem>>, vector<16x128xf32>,
    } else {
    }
    %c0_i32_4 = arith.constant 0 : i32
    %6 = arith.cmpi ne, %arg2, %c0_i32_4 : i32
    %7 = arith.extui %6 : i1 to i32
    %c0_i32_5 = arith.constant 0 : i32
    %8 = arith.cmpi ne, %7, %c0_i32_5 : i32
    scf.if %8 {
      %c0_8 = arith.constant 0 : index
      %c0_9 = arith.constant 0 : index
      %12 = vector.load %arg6[%c0_8, %c0_9] : memref<16x128xf32, #tpu.memory_space<vmem>>, vector<16x128xf32>
      %13 = arith.addf %12, %2 : vector<16x128xf32>
      %c0_10 = arith.constant 0 : index
      %c0_11 = arith.constant 0 : index
      %14 = vector.load %arg6[%c0_10, %c0_11] : memref<16x128xf32, #tpu.memory_space<vmem>>, vector<16x128xf32>
      tpu.vector_store %arg6[%c0_10, %c0_11], %13 {strides = array<i32>} : memref<16x128xf32, #tpu.memory_space<vmem>>, vector<16x128xf32>,
    } else {
    }
    %c0_i32_6 = arith.constant 0 : i32
    %9 = arith.cmpi eq, %arg2, %c0_i32_6 : i32
    %10 = arith.extui %9 : i1 to i32
    %c0_i32_7 = arith.constant 0 : i32
    %11 = arith.cmpi ne, %10, %c0_i32_7 : i32
    scf.if %11 {
      %c0_8 = arith.constant 0 : index
      %c0_9 = arith.constant 0 : index
      %12 = vector.load %arg6[%c0_8, %c0_9] : memref<16x128xf32, #tpu.memory_space<vmem>>, vector<16x128xf32>
      %c0_10 = arith.constant 0 : index
      %c0_11 = arith.constant 0 : index
      %13 = vector.load %arg5[%c0_10, %c0_11] : memref<1x128xf32, #tpu.memory_space<vmem>>, vector<1x128xf32>
      %14 = vector.broadcast %13 : vector<1x128xf32> to vector<16x128xf32>
      %15 = arith.addf %12, %14 : vector<16x128xf32>
      %c0_12 = arith.constant 0 : index
      %c0_13 = arith.constant 0 : index
      %16 = vector.load %arg6[%c0_12, %c0_13] : memref<16x128xf32, #tpu.memory_space<vmem>>, vector<16x128xf32>
      tpu.vector_store %arg6[%c0_12, %c0_13], %15 {strides = array<i32>} : memref<16x128xf32, #tpu.memory_space<vmem>>, vector<16x128xf32>,
    } else {
    }
    return
  }
  func.func @transform_0(%arg0: i32, %arg1: i32, %arg2: i32) -> (i32, i32) {
    %c0_i32 = arith.constant 0 : i32
    return %arg0, %arg2 : i32, i32
  }
  func.func @transform_1(%arg0: i32, %arg1: i32, %arg2: i32) -> (i32, i32) {
    %c0_i32 = arith.constant 0 : i32
    return %arg2, %arg1 : i32, i32
  }
  func.func @transform_2(%arg0: i32, %arg1: i32, %arg2: i32) -> (i32, i32) {
    %c0_i32 = arith.constant 0 : i32
    %c0_i32_0 = arith.constant 0 : i32
    return %c0_i32, %arg1 : i32, i32
  }
  func.func @transform_3(%arg0: i32, %arg1: i32, %arg2: i32) -> (i32, i32) {
    %c0_i32 = arith.constant 0 : i32
    return %arg0, %arg1 : i32, i32
  }
}

</mosaic_0001>

<llo_original>
// kernel: tpu_custom_call.1
$region0: #{tpu_custom_call.1}
  #allocation0 [shape = 'u32[]', space=smem, size = 0x4, offset = 0x4, fixed_abs, tag = 'smem constant byte address 0x4 - core index']
  #allocation1 [shape = 'u32[144,128]{1,0:T(1,128)}', space=vmem, size = 0x12000, scoped, tag = 'internal scratch']
  %s0 = inlined_call_operand.hbm [shape: bf16[16,128], index: 0, kind: input, shape index: {}]
  %s1 = inlined_call_operand.hbm [shape: bf16[128,128], index: 1, kind: input, shape index: {}]
  %s2 = inlined_call_operand.vmem [shape: f32[1,128], index: 2, kind: input, shape index: {}]
  %s3 = inlined_call_operand.hbm [shape: f32[16,128], index: 3, kind: output, shape index: {}]
  %s4 = sld [smem:[#allocation0]]
  $region42: #{tpu_custom_call.1} parent=0
    _
  %s6 = ssub.s32 1, %s4
  %s7 = scalar_select 0, %s6, %s4
  $region1: #{tpu_custom_call.1} parent=0
    #allocation2 [shape = 'u8[4096]{0}', space=vmem, size = 0x1000, scoped, tag = 'input window, operand 0, single buffered']
    #allocation3 [shape = 's32[1]{0}', space=sflag, size = 0x4, scoped, tag = 'scoped memory for tpu_custom_call.1']
    #allocation4 [shape = 's32[1]{0}', space=sflag, size = 0x4, scoped, tag = 'scoped memory for tpu_custom_call.1']
    #allocation5 [shape = 'u8[32768]{0}', space=vmem, size = 0x8000, scoped, tag = 'input window, operand 1, single buffered']
    #allocation6 [shape = 's32[1]{0}', space=sflag, size = 0x4, scoped, tag = 'scoped memory for tpu_custom_call.1']
    #allocation7 [shape = 'u8[8192]{0}', space=vmem, size = 0x2000, scoped, tag = 'output window, operand 0, single buffered']
    %8 = vsyncpa [#allocation3], 0
    %9 = vsyncpa [#allocation6], 0
    %10 = vsyncpa [#allocation4], 0
    // Predicated region
    $region2: #{tpu_custom_call.1} parent=1 // pred_check
      _
    $region3: #{tpu_custom_call.1} parent=1 // pred_check_branch
      %12 = sbr.rel (0) target = $region5
    $region4: #{tpu_custom_call.1} parent=1 // pred_region
      %s14 = ssub.s32 128, 128
      %15 = vsyncadd [#allocation3], %s14
      %s16 = sshll.u32 [#allocation2], 4
      %s17 = int_to_ptr.vmem [resolvable:$true] %s16
      %22 = dma.hbm_to_vmem [thread:$0]  %s0, 128, %s17, [#allocation3], 64, 64, 4
    $region5: #{tpu_custom_call.1} parent=1 // pred_fallthru
      _
    // Predicated region
    $region6: #{tpu_custom_call.1} parent=1 // pred_check
      _
    $region7: #{tpu_custom_call.1} parent=1 // pred_check_branch
      %24 = sbr.rel (0) target = $region9
    $region8: #{tpu_custom_call.1} parent=1 // pred_region
      %s26 = ssub.s32 1024, 1024
      %27 = vsyncadd [#allocation6], %s26
      %s28 = sshll.u32 [#allocation5], 4
      %s29 = int_to_ptr.vmem [resolvable:$true] %s28
      %34 = dma.hbm_to_vmem [thread:$0]  %s1, 1024, %s29, [#allocation6], 64, 64, 4
    $region9: #{tpu_custom_call.1} parent=1 // pred_fallthru
      _
    // Predicated region
    $region10: #{tpu_custom_call.1} parent=1 // pred_check
      _
    $region11: #{tpu_custom_call.1} parent=1 // pred_check_branch
      %36 = sbr.rel (0) target = $region13
    $region12: #{tpu_custom_call.1} parent=1 // pred_region
      _
    $region13: #{tpu_custom_call.1} parent=1 // pred_fallthru
      _
    // Predicated region
    $region14: #{tpu_custom_call.1} parent=1 // pred_check
      _
    $region15: #{tpu_custom_call.1} parent=1 // pred_check_branch
      %38 = sbr.rel (0) target = $region17
    $region16: #{tpu_custom_call.1} parent=1 // pred_region
      %39 = dma.done [#allocation3], 128
    $region17: #{tpu_custom_call.1} parent=1 // pred_fallthru
      _
    // Predicated region
    $region18: #{tpu_custom_call.1} parent=1 // pred_check
      _
    $region19: #{tpu_custom_call.1} parent=1 // pred_check_branch
      %41 = sbr.rel (0) target = $region21
    $region20: #{tpu_custom_call.1} parent=1 // pred_region
      %42 = dma.done [#allocation6], 1024
    $region21: #{tpu_custom_call.1} parent=1 // pred_fallthru
      _
    %v44 = vld [vmem:[#allocation2] sm:$0xf]
    %v45 = vld [vmem:[#allocation2 + $0x4] sm:$0xf]
    %v46 = vld [vmem:[#allocation5] sm:$0xf]
    %v47 = vld [vmem:[#allocation5 + $0x4] sm:$0xf]
    %v48 = vld [vmem:[#allocation5 + $0x8] sm:$0xf]
    %v49 = vld [vmem:[#allocation5 + $0xc] sm:$0xf]
    %v50 = vld [vmem:[#allocation5 + $0x10] sm:$0xf]
    %v51 = vld [vmem:[#allocation5 + $0x14] sm:$0xf]
    %v52 = vld [vmem:[#allocation5 + $0x18] sm:$0xf]
    %v53 = vld [vmem:[#allocation5 + $0x1c] sm:$0xf]
    %v54 = vld [vmem:[#allocation5 + $0x20] sm:$0xf]
    %v55 = vld [vmem:[#allocation5 + $0x24] sm:$0xf]
    %v56 = vld [vmem:[#allocation5 + $0x28] sm:$0xf]
    %v57 = vld [vmem:[#allocation5 + $0x2c] sm:$0xf]
    %v58 = vld [vmem:[#allocation5 + $0x30] sm:$0xf]
    %v59 = vld [vmem:[#allocation5 + $0x34] sm:$0xf]
    %v60 = vld [vmem:[#allocation5 + $0x38] sm:$0xf]
    %v61 = vld [vmem:[#allocation5 + $0x3c] sm:$0xf]
    %v64 = vunpack.c.l.b16 %v44
    %v65 = vunpack.c.l.b16 %v45
    %v66 = vpack.c.b16 %v65, %v64
    %v84 = vunpack.c.l.b16 %v46
    %v85 = vunpack.c.l.b16 %v47
    %v86 = vunpack.c.l.b16 %v48
    %v87 = vunpack.c.l.b16 %v49
    %v88 = vunpack.c.l.b16 %v50
    %v89 = vunpack.c.l.b16 %v51
    %v90 = vunpack.c.l.b16 %v52
    %v91 = vunpack.c.l.b16 %v53
    %v92 = vunpack.c.l.b16 %v54
    %v93 = vunpack.c.l.b16 %v55
    %v94 = vunpack.c.l.b16 %v56
    %v95 = vunpack.c.l.b16 %v57
    %v96 = vunpack.c.l.b16 %v58
    %v97 = vunpack.c.l.b16 %v59
    %v98 = vunpack.c.l.b16 %v60
    %v99 = vunpack.c.l.b16 %v61
    %v100 = vpack.c.b16 %v85, %v84
    %v101 = vpack.c.b16 %v87, %v86
    %v102 = vpack.c.b16 %v89, %v88
    %v103 = vpack.c.b16 %v91, %v90
    %v104 = vpack.c.b16 %v93, %v92
    %v105 = vpack.c.b16 %v95, %v94
    %v106 = vpack.c.b16 %v97, %v96
    %v107 = vpack.c.b16 %v99, %v98
    %116 = vmatprep.subr.bf16.mxu0 0
    %117 = vmatpush1.bf16.msra.mxu0 %v100
    %118 = vmatprep.subr.bf16.mxu0 0
    %119 = vmatpush1.bf16.msra.mxu0 %v101
    %120 = vmatprep.subr.bf16.mxu0 0
    %121 = vmatpush1.bf16.msra.mxu0 %v102
    %122 = vmatprep.subr.bf16.mxu0 0
    %123 = vmatpush1.bf16.msra.mxu0 %v103
    %124 = vmatprep.subr.bf16.mxu0 0
    %125 = vmatpush1.bf16.msra.mxu0 %v104
    %126 = vmatprep.subr.bf16.mxu0 0
    %127 = vmatpush1.bf16.msra.mxu0 %v105
    %128 = vmatprep.subr.bf16.mxu0 0
    %129 = vmatpush1.bf16.msra.mxu0 %v106
    %130 = vmatprep.subr.bf16.mxu0 0
    %131 = vmatpush1.bf16.msra.mxu0 %v107
    %132 = vmatprep.subr.bf16.mxu0 0
    %133 = vmatpush1.bf16.msra.mxu0 0
    %134 = vmatprep.subr.bf16.mxu0 0
    %135 = vmatpush1.bf16.msra.mxu0 0
    %136 = vmatprep.subr.bf16.mxu0 0
    %137 = vmatpush1.bf16.msra.mxu0 0
    %138 = vmatprep.subr.bf16.mxu0 0
    %139 = vmatpush1.bf16.msra.mxu0 0
    %140 = vmatprep.subr.bf16.mxu0 0
    %141 = vmatpush1.bf16.msra.mxu0 0
    %142 = vmatprep.subr.bf16.mxu0 0
    %143 = vmatpush1.bf16.msra.mxu0 0
    %144 = vmatprep.subr.bf16.mxu0 0
    %145 = vmatpush1.bf16.msra.mxu0 0
    %146 = vmatprep.subr.bf16.mxu0 0
    %147 = vmatpush1.bf16.msra.mxu0 0
    %148 = vmatprep.mubr.bf16.mxu0 0
    %149 = vmatmul.mubr.bf16.gmra.mrb[0].mxu0 %v66
    %v150 = vpop.f32.mrb[0].mxu0
    %v151 = vadd.f32 0.0, %v150
    %v152 = vpop.f32.mrb[0].mxu0
    %v153 = vpop.f32.mrb[0].mxu0
    %v154 = vadd.f32 0.0, %v153
    %v155 = vpop.f32.mrb[0].mxu0
    %156 = vdwg.mxu0
    %p157 = scmp.eq.s32.totalorder 0, 0
    // Predicated region
    $region22: #{tpu_custom_call.1} parent=1 // pred_check
      %p158 = pneg %p157
    $region23: #{tpu_custom_call.1} parent=1 // pred_check_branch
      %160 = sbr.rel (%p158) target = $region25
    $region24: #{tpu_custom_call.1} parent=1 // pred_region
      %161 = vst [vmem:[#allocation7] sm:$0xff] %v151
      %162 = vst [vmem:[#allocation7 + $0x8] sm:$0xff] %v154
    $region25: #{tpu_custom_call.1} parent=1 // pred_fallthru
      _
    %p163 = scmp.ne.s32.totalorder 0, 0
    // Predicated region
    $region26: #{tpu_custom_call.1} parent=1 // pred_check
      %p164 = pneg %p163
    $region27: #{tpu_custom_call.1} parent=1 // pred_check_branch
      %166 = sbr.rel (%p164) target = $region29
    $region28: #{tpu_custom_call.1} parent=1 // pred_region
      %v167 = vld [vmem:[#allocation7] sm:$0xff]
      %v168 = vld [vmem:[#allocation7 + $0x8] sm:$0xff]
      %v169 = vadd.f32 %v167, %v151
      %v170 = vadd.f32 %v168, %v154
      %171 = vst [vmem:[#allocation7] sm:$0xff] %v169
      %172 = vst [vmem:[#allocation7 + $0x8] sm:$0xff] %v170
    $region29: #{tpu_custom_call.1} parent=1 // pred_fallthru
      _
    // Predicated region
    $region30: #{tpu_custom_call.1} parent=1 // pred_check
      %p173 = pneg %p157
    $region31: #{tpu_custom_call.1} parent=1 // pred_check_branch
      %175 = sbr.rel (%p173) target = $region33
    $region32: #{tpu_custom_call.1} parent=1 // pred_region
      %v176 = vld [vmem:[#allocation7] sm:$0xff]
      %v177 = vld [vmem:[#allocation7 + $0x8] sm:$0xff]
      %v178 = vld [vmem:[%s2] sm:$0x1]
      %v180 = vlaneseq
      %v181 = vshrl.u32 %v180, 7
      %v182 = vsub.s32 0, %v181
      %v183 = vrot.slane %v178, %v182
      %v185 = vadd.f32 %v176, %v183
      %v186 = vadd.f32 %v177, %v183
      %187 = vst [vmem:[#allocation7] sm:$0xff] %v185
      %188 = vst [vmem:[#allocation7 + $0x8] sm:$0xff] %v186
    $region33: #{tpu_custom_call.1} parent=1 // pred_fallthru
      _
    // Predicated region
    $region34: #{tpu_custom_call.1} parent=1 // pred_check
      _
    $region35: #{tpu_custom_call.1} parent=1 // pred_check_branch
      %190 = sbr.rel (0) target = $region37
    $region36: #{tpu_custom_call.1} parent=1 // pred_region
      %s192 = ssub.s32 256, 256
      %193 = vsyncadd [#allocation4], %s192
      %s194 = sshll.u32 [#allocation7], 4
      %s195 = int_to_ptr.vmem [resolvable:$true] %s194
      %200 = dma.vmem_to_hbm [thread:$0]  %s195, 256, %s3, [#allocation4], 128, 128, 8
    $region37: #{tpu_custom_call.1} parent=1 // pred_fallthru
      _
    // Predicated region
    $region38: #{tpu_custom_call.1} parent=1 // pred_check
      _
    $region39: #{tpu_custom_call.1} parent=1 // pred_check_branch
      %202 = sbr.rel (0) target = $region41
    $region40: #{tpu_custom_call.1} parent=1 // pred_region
      %203 = dma.done [#allocation4], 256
    $region41: #{tpu_custom_call.1} parent=1 // pred_fallthru
      _
    %204 = vsyncpa [#allocation3], 1
    %205 = vsyncpa [#allocation6], 1
    %206 = vsyncpa [#allocation4], 1

</llo_original>
